<compile_context>
chip_gen: v6e
topology: v6e:2x2x1
jax: 0.10.0
libtpu: 0.0.40
codegen_flags: <defaults>
</compile_context>

<pallas_src>
import jax
import jax.numpy as jnp
from jax.experimental import pallas as pl
from jax.experimental.pallas import tpu as pltpu

_LANE = 128
_WIDTH_CANDIDATES = (2048, 1024, 512, 256, 128)


def _beta_relu_kernel(beta_ref, x_ref, o_ref):
    x = x_ref[...]
    beta = beta_ref[0].astype(x.dtype)
    o_ref[...] = jnp.where(x >= 1.0, x, beta)


def _sublane_multiple(dtype) -> int:
    # Packed-sublane minimum: 8 rows for 32-bit, 16 for bf16.
    itemsize = jnp.dtype(dtype).itemsize
    return max(8, 32 // itemsize)


def _tpu_tile_and_limit():
    """Generation-aware (tile_bytes, vmem_limit_bytes)."""
    vmem_cap = 64 * 1024 * 1024  # conservative default = v7x per-TC VMEM
    try:
        info = pltpu.get_tpu_info()
        vmem_cap = int(getattr(info, "vmem_capacity_bytes", vmem_cap))
    except Exception:
        pass
    if vmem_cap <= 64 * 1024 * 1024:
        # v7x: 3.2 TB/s HBM -> need ~8 MiB tiles to keep the ~0.35us/step
        # overhead under ~6%; 4x tile (32 MiB) still fits 64 MiB VMEM.
        tile_bytes = 8 * 1024 * 1024
    else:
        # v5e/v6e: slower HBM, 128 MiB VMEM; 4 MiB already puts step overhead
        # in the few-percent range without extra VMEM pressure.
        tile_bytes = 4 * 1024 * 1024
    vmem_limit = min(vmem_cap, 4 * tile_bytes + 8 * 1024 * 1024)
    return tile_bytes, vmem_limit


def _beta_relu_2d(x2d, beta_arr):
    """Run the elementwise kernel on a (rows, w) slab."""
    rows, w = x2d.shape
    dtype = x2d.dtype
    itemsize = jnp.dtype(dtype).itemsize
    sub = _sublane_multiple(dtype)
    tile_bytes, vmem_limit = _tpu_tile_and_limit()

    if rows <= sub or w < _LANE:
        # Tiny slab: one full block (block_shape == full array dims is always legal).
        tm = rows
        grid_m = 1
    else:
        # ~tile_bytes per block, rounded to the sublane multiple.
        tm = max(sub, (tile_bytes // (w * itemsize)) // sub * sub)
        # Keep at least 2 grid steps so the "parallel" axis can be sharded
        # across v7x's two TensorCores (no-op on single-core v5e/v6e).
        half_rows = ((pl.cdiv(rows, 2) + sub - 1) // sub) * sub
        tm = min(tm, half_rows)
        if tm >= rows:
            tm = rows
        grid_m = pl.cdiv(rows, tm)  # ragged last block is masked by Pallas

    cost = pl.CostEstimate(
        flops=rows * w,
        transcendentals=0,
        bytes_accessed=2 * rows * w * itemsize,
    )

    return pl.pallas_call(
        _beta_relu_kernel,
        out_shape=jax.ShapeDtypeStruct((rows, w), dtype),
        grid_spec=pltpu.PrefetchScalarGridSpec(
            num_scalar_prefetch=0,
            grid=(grid_m,),
            in_specs=[
                pl.BlockSpec(memory_space=pltpu.MemorySpace.SMEM),  # beta scalar
                pl.BlockSpec((tm, w), lambda i: (i, 0)),
            ],
            out_specs=pl.BlockSpec((tm, w), lambda i: (i, 0)),
        ),
        compiler_params=pltpu.CompilerParams(
            dimension_semantics=("parallel",),
            vmem_limit_bytes=vmem_limit,
        ),
        cost_estimate=cost,
    )(beta_arr, x2d)


def my_relu(x, beta):
    """Pallas implementation of MyRelu.forward: where(x >= 1.0, x, Beta)."""
    if not jnp.issubdtype(x.dtype, jnp.floating):
        # TODO(synk): integer/sub-byte dtypes would need explicit promotion
        # semantics for the `x >= 1.0` compare and Beta rounding; reject them.
        raise NotImplementedError("my_relu expects a floating-point input")

    orig_shape = x.shape
    n = x.size
    if n == 0:
        return x

    beta_arr = jnp.asarray([beta], dtype=jnp.float32)
    x_flat = jnp.ravel(x)

    # Zero-copy common path: widest lane-dense slab width that divides n exactly.
    for w in _WIDTH_CANDIDATES:
        if n % w == 0:
            out2d = _beta_relu_2d(x_flat.reshape(n // w, w), beta_arr)
            return out2d.reshape(orig_shape)

    # Unaligned n (< 128-multiple): stream the 128-aligned prefix through the
    # kernel and handle only the tiny (<128 element) tail separately.
    n_main = (n // _LANE) * _LANE
    if n_main == 0:
        out2d = _beta_relu_2d(x_flat.reshape(1, n), beta_arr)
        return out2d.reshape(orig_shape)

    w = next(c for c in _WIDTH_CANDIDATES if n_main % c == 0)
    main_out = _beta_relu_2d(x_flat[:n_main].reshape(n_main // w, w), beta_arr)
    tail_out = _beta_relu_2d(x_flat[n_main:].reshape(1, n - n_main), beta_arr)
    # TODO(synk): a scatter-style tail write into the main output buffer would
    # avoid this concatenate pass for very large unaligned tensors.
    out_flat = jnp.concatenate([main_out.reshape(-1), tail_out.reshape(-1)])
    return out_flat.reshape(orig_shape)


if __name__ == "__main__":
    key = jax.random.PRNGKey(0)
    Beta = 0.1  # module hyperparameter (deterministic, set in-script)

    def _ref(x, beta):
        return jnp.where(x >= 1.0, x, jnp.asarray(beta, dtype=x.dtype))

    # 1) Small NCHW activation tensor (aligned path: pure reshape views).
    x = jax.random.normal(key, (2, 4, 16, 16), dtype=jnp.float32) * 2.0
    out = jax.block_until_ready(my_relu(x, Beta))
    assert out.shape == x.shape and out.dtype == x.dtype
    assert jnp.allclose(out, _ref(x, Beta)), "mismatch vs reference (f32 aligned)"

    # 2) Awkward, non-128-multiple size (exercises aligned-prefix + tiny-tail path
    #    and a >=2-step grid).
    x2 = jax.random.normal(jax.random.PRNGKey(1), (3, 5, 7, 11), dtype=jnp.float32) * 2.0
    out2 = jax.block_until_ready(my_relu(x2, Beta))
    assert out2.shape == x2.shape and out2.dtype == x2.dtype
    assert jnp.allclose(out2, _ref(x2, Beta)), "mismatch vs reference (f32 ragged)"

    # 3) bf16 input (exercises dtype-aware sublane rounding).
    x3 = (jax.random.normal(jax.random.PRNGKey(2), (2, 4, 16, 16), dtype=jnp.float32) * 2.0
          ).astype(jnp.bfloat16)
    out3 = jax.block_until_ready(my_relu(x3, Beta))
    assert out3.shape == x3.shape and out3.dtype == x3.dtype
    assert jnp.allclose(out3.astype(jnp.float32), _ref(x3, Beta).astype(jnp.float32)), \
        "mismatch vs reference (bf16)"

    print("KERNEL_OK")
</pallas_src>

<mosaic_0001>
module attributes {stable_mosaic.version = 11 : i64} {
  func.func @_beta_relu_kernel(%arg0: i32, %arg1: memref<1xf32, #tpu.memory_space<smem>>, %arg2: memref<1x2048xf32, #tpu.memory_space<vmem>>, %arg3: memref<1x2048xf32, #tpu.memory_space<vmem>>) attributes {dimension_semantics = [#tpu.dimension_semantics<parallel>], iteration_bounds = array<i64: 1>, scalar_prefetch = 0 : i64, scratch_operands = 0 : i64, tpu.core_type = #tpu.core_type<tc>, window_params = [{transform_indices = @transform_0, window_bounds = array<i64: 1>}, {transform_indices = @transform_1, window_bounds = array<i64: 1, 2048>}, {transform_indices = @transform_2, window_bounds = array<i64: 1, 2048>}]} {
    %c0 = arith.constant 0 : index
    %c0_0 = arith.constant 0 : index
    %0 = vector.load %arg2[%c0, %c0_0] : memref<1x2048xf32, #tpu.memory_space<vmem>>, vector<1x2048xf32>
    %c0_1 = arith.constant 0 : index
    %1 = memref.load %arg1[%c0_1] : memref<1xf32, #tpu.memory_space<smem>>
    %cst = arith.constant 1.000000e+00 : f32
    %2 = vector.broadcast %cst : f32 to vector<1x2048xf32>
    %3 = arith.cmpf oge, %0, %2 : vector<1x2048xf32>
    %4 = vector.broadcast %1 : f32 to vector<1x2048xf32>
    %5 = arith.select %3, %0, %4 : vector<1x2048xi1>, vector<1x2048xf32>
    %c0_2 = arith.constant 0 : index
    %c0_3 = arith.constant 0 : index
    %6 = vector.load %arg3[%c0_2, %c0_3] : memref<1x2048xf32, #tpu.memory_space<vmem>>, vector<1x2048xf32>
    tpu.vector_store %arg3[%c0_2, %c0_3], %5 {strides = array<i32>} : memref<1x2048xf32, #tpu.memory_space<vmem>>, vector<1x2048xf32>,
    return
  }
  func.func @transform_0(%arg0: i32) -> i32 {
    %c0_i32 = arith.constant 0 : i32
    %c0_i32_0 = arith.constant 0 : i32
    return %c0_i32 : i32
  }
  func.func @transform_1(%arg0: i32) -> (i32, i32) {
    %c0_i32 = arith.constant 0 : i32
    %c0_i32_0 = arith.constant 0 : i32
    return %arg0, %c0_i32 : i32, i32
  }
  func.func @transform_2(%arg0: i32) -> (i32, i32) {
    %c0_i32 = arith.constant 0 : i32
    %c0_i32_0 = arith.constant 0 : i32
    return %arg0, %c0_i32 : i32, i32
  }
}

</mosaic_0001>

<llo_original>
// kernel: tpu_custom_call.1
$region0: #{tpu_custom_call.1}
  #allocation0 [shape = 'u32[]', space=smem, size = 0x4, offset = 0x4, fixed_abs, tag = 'smem constant byte address 0x4 - core index']
  #allocation1 [shape = 'u32[144,128]{1,0:T(1,128)}', space=vmem, size = 0x12000, scoped, tag = 'internal scratch']
  #allocation2 [shape = 'f32[1]{0:T(128)S(6)}', space=smem, size = 0x200, scoped, tag = 'scoped memory for tpu_custom_call.1']
  %s0 = inlined_call_operand.<no memory space> [shape: f32[1], index: 0, kind: input, shape index: {}]
  %s1 = inlined_call_operand.hbm [shape: f32[1,2048], index: 1, kind: input, shape index: {}]
  %s2 = inlined_call_operand.hbm [shape: f32[1,2048], index: 2, kind: output, shape index: {}]
  %s3 = sld [smem:[#allocation0]]
  $region22: #{tpu_custom_call.1} parent=0
    _
  %s5 = ssub.s32 1, %s3
  %s6 = scalar_select 0, %s5, %s3
  %7 = sst [smem:[#allocation2]] %s0
  $region1: #{tpu_custom_call.1} parent=0
    #allocation3 [shape = 'u8[8192]{0}', space=vmem, size = 0x2000, scoped, tag = 'input window, operand 1, single buffered']
    #allocation4 [shape = 's32[1]{0}', space=sflag, size = 0x4, scoped, tag = 'scoped memory for tpu_custom_call.1']
    #allocation5 [shape = 's32[1]{0}', space=sflag, size = 0x4, scoped, tag = 'scoped memory for tpu_custom_call.1']
    #allocation6 [shape = 'u8[8192]{0}', space=vmem, size = 0x2000, scoped, tag = 'output window, operand 0, single buffered']
    %8 = vsyncpa [#allocation4], 0
    %9 = vsyncpa [#allocation5], 0
    // Predicated region
    $region2: #{tpu_custom_call.1} parent=1 // pred_check
      _
    $region3: #{tpu_custom_call.1} parent=1 // pred_check_branch
      %11 = sbr.rel (0) target = $region5
    $region4: #{tpu_custom_call.1} parent=1 // pred_region
      _
    $region5: #{tpu_custom_call.1} parent=1 // pred_fallthru
      _
    // Predicated region
    $region6: #{tpu_custom_call.1} parent=1 // pred_check
      _
    $region7: #{tpu_custom_call.1} parent=1 // pred_check_branch
      %13 = sbr.rel (0) target = $region9
    $region8: #{tpu_custom_call.1} parent=1 // pred_region
      %s15 = ssub.s32 256, 256
      %16 = vsyncadd [#allocation4], %s15
      %s18 = sshll.u32 [#allocation3], 4
      %s19 = int_to_ptr.vmem [resolvable:$true] %s18
      %21 = dma.hbm_to_vmem [thread:$0]  %s1, 256, %s19, [#allocation4]
    $region9: #{tpu_custom_call.1} parent=1 // pred_fallthru
      _
    // Predicated region
    $region10: #{tpu_custom_call.1} parent=1 // pred_check
      _
    $region11: #{tpu_custom_call.1} parent=1 // pred_check_branch
      %23 = sbr.rel (0) target = $region13
    $region12: #{tpu_custom_call.1} parent=1 // pred_region
      %24 = dma.done [#allocation4], 256
    $region13: #{tpu_custom_call.1} parent=1 // pred_fallthru
      _
    %v25 = vld [vmem:[#allocation3] sm:$0xff]
    %v26 = vld [vmem:[#allocation3 + $0x8] sm:$0xff]
    %s27 = sld [smem:[#allocation2]]
    %vm28 = vcmp.ge.f32.partialorder %v25, 1.0
    %vm29 = vcmp.ge.f32.partialorder %v26, 1.0
    %v30 = vstv %s27
    %v31 = vsel %vm28, %v25, %v30
    %v32 = vsel %vm29, %v26, %v30
    %33 = vst [vmem:[#allocation6] sm:$0xff] %v31
    %34 = vst [vmem:[#allocation6 + $0x8] sm:$0xff] %v32
    // Predicated region
    $region14: #{tpu_custom_call.1} parent=1 // pred_check
      _
    $region15: #{tpu_custom_call.1} parent=1 // pred_check_branch
      %36 = sbr.rel (0) target = $region17
    $region16: #{tpu_custom_call.1} parent=1 // pred_region
      %s38 = ssub.s32 256, 256
      %39 = vsyncadd [#allocation5], %s38
      %s41 = sshll.u32 [#allocation6], 4
      %s42 = int_to_ptr.vmem [resolvable:$true] %s41
      %44 = dma.vmem_to_hbm [thread:$0]  %s42, 256, %s2, [#allocation5]
    $region17: #{tpu_custom_call.1} parent=1 // pred_fallthru
      _
    // Predicated region
    $region18: #{tpu_custom_call.1} parent=1 // pred_check
      _
    $region19: #{tpu_custom_call.1} parent=1 // pred_check_branch
      %46 = sbr.rel (0) target = $region21
    $region20: #{tpu_custom_call.1} parent=1 // pred_region
      %47 = dma.done [#allocation5], 256
    $region21: #{tpu_custom_call.1} parent=1 // pred_fallthru
      _
    %48 = vsyncpa [#allocation4], 1
    %49 = vsyncpa [#allocation5], 1

</llo_original>
